<compile_context>
chip_gen: v7x
topology: tpu7x:2x2x1
jax: 0.10.0
libtpu: 0.0.40
codegen_flags: <defaults>
</compile_context>

<pallas_src>
import functools

import jax
import jax.numpy as jnp
from jax.experimental import pallas as pl
from jax.experimental.pallas import tpu as pltpu


def _round_up(x, m):
    return ((x + m - 1) // m) * m


def _rnnpool_kernel(x_ref, wih_ref, whh_ref, b_ref, o_ref, *, stride, fold, embed):
    """One grid step: windowed tanh-RNN recurrence for a slab of folded rows.

    x_ref  : (R, fold*stride*E) window-major: window j of a row occupies lanes
             [j*stride*E, (j+1)*stride*E); time t of that window is the E lanes
             at [j*stride*E + t*E, ...).  This is a FREE reshape of (B, S, E).
    wih_ref: (fold*E, fold*E)   kron(I_fold, W_ih^T)
    whh_ref: (fold*E, fold*E)   kron(I_fold, W_hh^T)
    b_ref  : (1, fold*E)        (b_ih + b_hh) tiled over the folded windows, f32
    o_ref  : (R, fold*E)        last hidden state per window, lane-dense
    """
    E = embed
    fe = fold * E
    se = stride * E
    x = x_ref[...]
    wih = wih_ref[...]
    whh = whh_ref[...]
    b = b_ref[...]

    def x_t(t):
        # Gather the time-t slice of every folded window: `fold` lane slices of
        # width E at stride*E spacing -> one lane-dense (R, fold*E) operand.
        # Pure lane shuffles (XLU) -- hidden under the MXU / HBM work.
        if fold == 1:
            return x[:, t * E:(t + 1) * E]
        return jnp.concatenate(
            [x[:, j * se + t * E: j * se + (t + 1) * E] for j in range(fold)],
            axis=-1)

    # Hoisted input projection: `stride` dense K=N=fold*E MXU matmuls (one per
    # time step) replace the old Kronecker-scattered K=N=fold*stride*E matmul.
    xb = [jnp.dot(x_t(t), wih, preferred_element_type=jnp.float32) + b
          for t in range(stride)]

    # t == 0: h0 == 0 (nn.RNN default) -> recurrent matmul skipped entirely.
    h = jnp.tanh(xb[0])
    # Remaining steps: serial recurrence, one matmul + one tanh per step.
    # TODO(synk): if a bundle dump shows MXU and EUP strictly back-to-back here,
    # split the row slab in two and interleave matmul(half B) with tanh(half A).
    for t in range(1, stride):                 # static unroll; stride is small
        h = jnp.tanh(xb[t] + jnp.dot(h.astype(whh.dtype), whh,
                                     preferred_element_type=jnp.float32))

    o_ref[...] = h.astype(o_ref.dtype)         # lane-dense (R, fold*E) store


def _prepare_weights(w_ih, w_hh, b_ih, b_hh, fold, dt):
    """Tiny (fold*E, fold*E) constants.  In a real model hoist/jit this once and
    reuse across calls instead of rebuilding every invocation."""
    eye = jnp.eye(fold, dtype=dt)
    wih_kron = jnp.kron(eye, w_ih.T.astype(dt))          # kron(I_fold, W_ih^T)
    whh_kron = jnp.kron(eye, w_hh.T.astype(dt))          # kron(I_fold, W_hh^T)
    b_fold = jnp.tile((b_ih + b_hh).astype(jnp.float32), fold)[None, :]
    return wih_kron, whh_kron, b_fold


def rnn_pool(x, w_ih, w_hh, b_ih, b_hh, kernel_size, *, mask=False,
             tile_rows=512, lanes=128, num_cores=1, out_dtype=jnp.float32):
    """Pallas implementation of RNNPool.forward.

    x          : (B, S, E). Matmul operands run in x.dtype (feed bf16 for MXU
                 peak and half the HBM bytes); accumulation/bias/tanh stay f32.
    kernel_size: pooling window length == RNN length == stride.
    tile_rows  : folded-layout rows per grid step (each row packs lanes//E
                 windows when E < lanes). 512-1024 is the measured sweet spot.
    lanes      : lane width of the folded state (128; try 256 on v6e/v7x if the
                 recurrence is MXU-bound, to fill the 256x256 MXU).
    num_cores  : >1 adds an explicit CORE_PARALLEL leading grid axis (set 2 on
                 v7x to split rows across its two TensorCores).
    out_dtype  : f32 matches torch exactly; bf16 halves output HBM traffic.
    """
    stride = kernel_size
    if mask:
        # torch mask path == x[:, :, ::stride]: pure strided slicing, plain JAX.
        return x[:, :, ::stride]

    B, S, E = x.shape
    # TODO(synk): torch allows S % stride != 0 (shorter final window); unhandled.
    assert S % stride == 0, "sequence length must be a multiple of kernel_size"
    W = S // stride                   # pooling windows per batch row
    N = B * W                         # total windows (the parallel dim)
    dt = x.dtype                      # matmul operand dtype (bf16 recommended)

    # Lane-dense folding: pack `fold` independent windows into one `lanes` row.
    fold = lanes // E if (E < lanes and lanes % E == 0) else 1
    fe = fold * E

    # ---- input: FREE reshapes only (x read from HBM exactly once) -----------
    xw = x.reshape(N, stride * E)                    # one pooling window per row
    N_fold = _round_up(N, fold)
    if N_fold != N:                   # rare: pads < fold rows (small copy)
        xw = jnp.pad(xw, ((0, N_fold - N), (0, 0)))
    R_total = N_fold // fold
    x2 = xw.reshape(R_total, fold * stride * E)

    # ---- tiling: big tiles, no row padding; ragged last block is masked -----
    pack = 8 * max(1, 4 // jnp.dtype(dt).itemsize)   # f32: 8  bf16: 16  int8: 32
    tile_r = _round_up(max(int(tile_rows), 1), pack)
    if tile_r >= R_total:
        tile_r = R_total              # single block covering the whole array
    steps = pl.cdiv(R_total, tile_r)

    wih_kron, whh_kron, b_fold = _prepare_weights(w_ih, w_hh, b_ih, b_hh, fold, dt)

    kernel = functools.partial(_rnnpool_kernel, stride=stride, fold=fold, embed=E)
    x_block = (tile_r, fold * stride * E)
    o_block = (tile_r, fe)

    if num_cores > 1:
        # Explicit TensorCore split (v7x): leading CORE_PARALLEL axis; each core
        # walks its own contiguous row range with full-size tiles.
        per_core = pl.cdiv(steps, num_cores)
        grid = (num_cores, per_core)

        def row(c, i):                # clamp the spare core's overhang block
            return jnp.minimum(c * per_core + i, steps - 1)

        in_specs = [
            pl.BlockSpec(x_block, lambda c, i: (row(c, i), 0)),
            pl.BlockSpec((fe, fe), lambda c, i: (0, 0)),
            pl.BlockSpec((fe, fe), lambda c, i: (0, 0)),
            pl.BlockSpec((1, fe), lambda c, i: (0, 0)),
        ]
        out_specs = pl.BlockSpec(o_block, lambda c, i: (row(c, i), 0))
        dims = (pltpu.CORE_PARALLEL, pltpu.ARBITRARY)
    else:
        grid = (steps,)
        in_specs = [
            pl.BlockSpec(x_block, lambda i: (i, 0)),
            pl.BlockSpec((fe, fe), lambda i: (0, 0)),
            pl.BlockSpec((fe, fe), lambda i: (0, 0)),
            pl.BlockSpec((1, fe), lambda i: (0, 0)),
        ]
        out_specs = pl.BlockSpec(o_block, lambda i: (i, 0))
        dims = ("arbitrary",)

    out = pl.pallas_call(
        kernel,
        out_shape=jax.ShapeDtypeStruct((R_total, fe), out_dtype),
        grid_spec=pltpu.PrefetchScalarGridSpec(
            num_scalar_prefetch=0,
            grid=grid,
            in_specs=in_specs,
            out_specs=out_specs,
        ),
        compiler_params=pltpu.CompilerParams(
            dimension_semantics=dims,
            vmem_limit_bytes=32 * 1024 * 1024),
    )(x2, wih_kron, whh_kron, b_fold)

    # Folded (R_total, fold*E) -> (N_fold, E) is a free row-major reshape.
    out = out.reshape(N_fold, E)
    if N_fold != N:
        out = out[:N]
    return out.reshape(B, W, E)


def rnn_pool_ref(x, w_ih, w_hh, b_ih, b_hh, kernel_size):
    """Pure-JAX reference matching torch nn.RNN(batch_first=True) semantics."""
    B, S, E = x.shape
    stride = kernel_size
    W = S // stride
    xw = x.reshape(B * W, stride, E)
    xs = jnp.swapaxes(xw, 0, 1)                       # (stride, N, E)

    def step(h, xt):
        h = jnp.tanh(xt @ w_ih.T + b_ih + h @ w_hh.T + b_hh)
        return h, None

    h0 = jnp.zeros((B * W, E), jnp.float32)
    h_last, _ = jax.lax.scan(step, h0, xs)
    return h_last.reshape(B, W, E)


if __name__ == "__main__":
    B, S, E, K = 2, 8, 32, 4          # batch, seq, embed_dim, kernel_size
    key = jax.random.PRNGKey(0)
    kx, k1, k2, k3, k4 = jax.random.split(key, 5)
    bound = 1.0 / (E ** 0.5)          # nn.RNN default init range

    x = jax.random.normal(kx, (B, S, E), jnp.float32)
    w_ih = jax.random.uniform(k1, (E, E), jnp.float32, -bound, bound)
    w_hh = jax.random.uniform(k2, (E, E), jnp.float32, -bound, bound)
    b_ih = jax.random.uniform(k3, (E,), jnp.float32, -bound, bound)
    b_hh = jax.random.uniform(k4, (E,), jnp.float32, -bound, bound)

    ref = rnn_pool_ref(x, w_ih, w_hh, b_ih, b_hh, K)

    # f32 operands (single block, fold=4 lane-dense output).
    out_f32 = jax.block_until_ready(rnn_pool(x, w_ih, w_hh, b_ih, b_hh, K))
    assert out_f32.shape == (B, S // K, E), out_f32.shape
    assert jnp.allclose(out_f32, ref, atol=1e-4, rtol=1e-4), "f32 mismatch"

    # bf16 operands (fast path: bf16 MXU, f32 accumulation) -> looser tolerance.
    out_bf16 = jax.block_until_ready(
        rnn_pool(x.astype(jnp.bfloat16), w_ih, w_hh, b_ih, b_hh, K))
    assert jnp.allclose(out_bf16, ref, atol=5e-2, rtol=5e-2), "bf16 mismatch"

    # Larger shape: multi-step grid with a RAGGED (masked) last block, f32.
    B2, S2 = 3, 48
    x2 = jax.random.normal(kx, (B2, S2, E), jnp.float32)
    ref2 = rnn_pool_ref(x2, w_ih, w_hh, b_ih, b_hh, K)
    out2 = jax.block_until_ready(
        rnn_pool(x2, w_ih, w_hh, b_ih, b_hh, K, tile_rows=8))
    assert out2.shape == (B2, S2 // K, E), out2.shape
    assert jnp.allclose(out2, ref2, atol=1e-4, rtol=1e-4), "ragged-grid mismatch"

    # bf16 operands + bf16 output knob at default tile size.
    out3 = jax.block_until_ready(
        rnn_pool(x2.astype(jnp.bfloat16), w_ih, w_hh, b_ih, b_hh, K,
                 out_dtype=jnp.bfloat16))
    assert jnp.allclose(out3.astype(jnp.float32), ref2, atol=5e-2, rtol=5e-2), \
        "bf16-out mismatch"

    # mask=True path (pure strided slicing, plain JAX).
    m = rnn_pool(x, w_ih, w_hh, b_ih, b_hh, K, mask=True)
    assert jnp.allclose(m, x[:, :, ::K]), "mask path mismatch"

    print("KERNEL_OK")
</pallas_src>

<mosaic_0001>
module attributes {stable_mosaic.version = 11 : i64} {
  func.func @_rnnpool_kernel(%arg0: i32, %arg1: memref<1x512xf32, #tpu.memory_space<vmem>>, %arg2: memref<128x128xf32, #tpu.memory_space<vmem>>, %arg3: memref<128x128xf32, #tpu.memory_space<vmem>>, %arg4: memref<1x128xf32, #tpu.memory_space<vmem>>, %arg5: memref<1x128xf32, #tpu.memory_space<vmem>>) attributes {dimension_semantics = [#tpu.dimension_semantics<arbitrary>], iteration_bounds = array<i64: 1>, scalar_prefetch = 0 : i64, scratch_operands = 0 : i64, tpu.core_type = #tpu.core_type<tc>, window_params = [{transform_indices = @transform_0, window_bounds = array<i64: 1, 512>}, {pipeline_mode = #tpu.pipeline_mode<synchronous>, transform_indices = @transform_1, window_bounds = array<i64: 128, 128>}, {pipeline_mode = #tpu.pipeline_mode<synchronous>, transform_indices = @transform_2, window_bounds = array<i64: 128, 128>}, {pipeline_mode = #tpu.pipeline_mode<synchronous>, transform_indices = @transform_3, window_bounds = array<i64: 1, 128>}, {transform_indices = @transform_4, window_bounds = array<i64: 1, 128>}]} {
    %c0 = arith.constant 0 : index
    %c0_0 = arith.constant 0 : index
    %0 = vector.load %arg1[%c0, %c0_0] : memref<1x512xf32, #tpu.memory_space<vmem>>, vector<1x512xf32>
    %c0_1 = arith.constant 0 : index
    %c0_2 = arith.constant 0 : index
    %1 = vector.load %arg2[%c0_1, %c0_2] : memref<128x128xf32, #tpu.memory_space<vmem>>, vector<128x128xf32>
    %c0_3 = arith.constant 0 : index
    %c0_4 = arith.constant 0 : index
    %2 = vector.load %arg3[%c0_3, %c0_4] : memref<128x128xf32, #tpu.memory_space<vmem>>, vector<128x128xf32>
    %c0_5 = arith.constant 0 : index
    %c0_6 = arith.constant 0 : index
    %3 = vector.load %arg4[%c0_5, %c0_6] : memref<1x128xf32, #tpu.memory_space<vmem>>, vector<1x128xf32>
    %4 = vector.extract_strided_slice %0 {offsets = [0, 0], sizes = [1, 32], strides = [1, 1]} : vector<1x512xf32> to vector<1x32xf32>
    %5 = vector.extract_strided_slice %0 {offsets = [0, 128], sizes = [1, 32], strides = [1, 1]} : vector<1x512xf32> to vector<1x32xf32>
    %6 = vector.extract_strided_slice %0 {offsets = [0, 256], sizes = [1, 32], strides = [1, 1]} : vector<1x512xf32> to vector<1x32xf32>
    %7 = vector.extract_strided_slice %0 {offsets = [0, 384], sizes = [1, 32], strides = [1, 1]} : vector<1x512xf32> to vector<1x32xf32>
    %8 = tpu.concatenate %4, %5, %6, %7 in 1 : vector<1x32xf32>, vector<1x32xf32>, vector<1x32xf32>, vector<1x32xf32> -> vector<1x128xf32>
    %cst = arith.constant dense<0.000000e+00> : vector<1x128xf32>
    %9 = tpu.matmul %8, %1, %cst {dimension_numbers = #tpu.dot_dimension_numbers<[1], [0], [0], [1], [0, 0, 1, 1], [], []>} : vector<1x128xf32>, vector<128x128xf32>, vector<1x128xf32> -> vector<1x128xf32>
    %10 = arith.addf %9, %3 : vector<1x128xf32>
    %11 = vector.extract_strided_slice %0 {offsets = [0, 32], sizes = [1, 32], strides = [1, 1]} : vector<1x512xf32> to vector<1x32xf32>
    %12 = vector.extract_strided_slice %0 {offsets = [0, 160], sizes = [1, 32], strides = [1, 1]} : vector<1x512xf32> to vector<1x32xf32>
    %13 = vector.extract_strided_slice %0 {offsets = [0, 288], sizes = [1, 32], strides = [1, 1]} : vector<1x512xf32> to vector<1x32xf32>
    %14 = vector.extract_strided_slice %0 {offsets = [0, 416], sizes = [1, 32], strides = [1, 1]} : vector<1x512xf32> to vector<1x32xf32>
    %15 = tpu.concatenate %11, %12, %13, %14 in 1 : vector<1x32xf32>, vector<1x32xf32>, vector<1x32xf32>, vector<1x32xf32> -> vector<1x128xf32>
    %cst_7 = arith.constant dense<0.000000e+00> : vector<1x128xf32>
    %16 = tpu.matmul %15, %1, %cst_7 {dimension_numbers = #tpu.dot_dimension_numbers<[1], [0], [0], [1], [0, 0, 1, 1], [], []>} : vector<1x128xf32>, vector<128x128xf32>, vector<1x128xf32> -> vector<1x128xf32>
    %17 = arith.addf %16, %3 : vector<1x128xf32>
    %18 = vector.extract_strided_slice %0 {offsets = [0, 64], sizes = [1, 32], strides = [1, 1]} : vector<1x512xf32> to vector<1x32xf32>
    %19 = vector.extract_strided_slice %0 {offsets = [0, 192], sizes = [1, 32], strides = [1, 1]} : vector<1x512xf32> to vector<1x32xf32>
    %20 = vector.extract_strided_slice %0 {offsets = [0, 320], sizes = [1, 32], strides = [1, 1]} : vector<1x512xf32> to vector<1x32xf32>
    %21 = vector.extract_strided_slice %0 {offsets = [0, 448], sizes = [1, 32], strides = [1, 1]} : vector<1x512xf32> to vector<1x32xf32>
    %22 = tpu.concatenate %18, %19, %20, %21 in 1 : vector<1x32xf32>, vector<1x32xf32>, vector<1x32xf32>, vector<1x32xf32> -> vector<1x128xf32>
    %cst_8 = arith.constant dense<0.000000e+00> : vector<1x128xf32>
    %23 = tpu.matmul %22, %1, %cst_8 {dimension_numbers = #tpu.dot_dimension_numbers<[1], [0], [0], [1], [0, 0, 1, 1], [], []>} : vector<1x128xf32>, vector<128x128xf32>, vector<1x128xf32> -> vector<1x128xf32>
    %24 = arith.addf %23, %3 : vector<1x128xf32>
    %25 = vector.extract_strided_slice %0 {offsets = [0, 96], sizes = [1, 32], strides = [1, 1]} : vector<1x512xf32> to vector<1x32xf32>
    %26 = vector.extract_strided_slice %0 {offsets = [0, 224], sizes = [1, 32], strides = [1, 1]} : vector<1x512xf32> to vector<1x32xf32>
    %27 = vector.extract_strided_slice %0 {offsets = [0, 352], sizes = [1, 32], strides = [1, 1]} : vector<1x512xf32> to vector<1x32xf32>
    %28 = vector.extract_strided_slice %0 {offsets = [0, 480], sizes = [1, 32], strides = [1, 1]} : vector<1x512xf32> to vector<1x32xf32>
    %29 = tpu.concatenate %25, %26, %27, %28 in 1 : vector<1x32xf32>, vector<1x32xf32>, vector<1x32xf32>, vector<1x32xf32> -> vector<1x128xf32>
    %cst_9 = arith.constant dense<0.000000e+00> : vector<1x128xf32>
    %30 = tpu.matmul %29, %1, %cst_9 {dimension_numbers = #tpu.dot_dimension_numbers<[1], [0], [0], [1], [0, 0, 1, 1], [], []>} : vector<1x128xf32>, vector<128x128xf32>, vector<1x128xf32> -> vector<1x128xf32>
    %31 = arith.addf %30, %3 : vector<1x128xf32>
    %32 = math.tanh %10 : vector<1x128xf32>
    %cst_10 = arith.constant dense<0.000000e+00> : vector<1x128xf32>
    %33 = tpu.matmul %32, %2, %cst_10 {dimension_numbers = #tpu.dot_dimension_numbers<[1], [0], [0], [1], [0, 0, 1, 1], [], []>} : vector<1x128xf32>, vector<128x128xf32>, vector<1x128xf32> -> vector<1x128xf32>
    %34 = arith.addf %17, %33 : vector<1x128xf32>
    %35 = math.tanh %34 : vector<1x128xf32>
    %cst_11 = arith.constant dense<0.000000e+00> : vector<1x128xf32>
    %36 = tpu.matmul %35, %2, %cst_11 {dimension_numbers = #tpu.dot_dimension_numbers<[1], [0], [0], [1], [0, 0, 1, 1], [], []>} : vector<1x128xf32>, vector<128x128xf32>, vector<1x128xf32> -> vector<1x128xf32>
    %37 = arith.addf %24, %36 : vector<1x128xf32>
    %38 = math.tanh %37 : vector<1x128xf32>
    %cst_12 = arith.constant dense<0.000000e+00> : vector<1x128xf32>
    %39 = tpu.matmul %38, %2, %cst_12 {dimension_numbers = #tpu.dot_dimension_numbers<[1], [0], [0], [1], [0, 0, 1, 1], [], []>} : vector<1x128xf32>, vector<128x128xf32>, vector<1x128xf32> -> vector<1x128xf32>
    %40 = arith.addf %31, %39 : vector<1x128xf32>
    %41 = math.tanh %40 : vector<1x128xf32>
    %c0_13 = arith.constant 0 : index
    %c0_14 = arith.constant 0 : index
    %42 = vector.load %arg5[%c0_13, %c0_14] : memref<1x128xf32, #tpu.memory_space<vmem>>, vector<1x128xf32>
    tpu.vector_store %arg5[%c0_13, %c0_14], %41 {strides = array<i32>} : memref<1x128xf32, #tpu.memory_space<vmem>>, vector<1x128xf32>,
    return
  }
  func.func @transform_0(%arg0: i32) -> (i32, i32) {
    %c0_i32 = arith.constant 0 : i32
    %c0_i32_0 = arith.constant 0 : i32
    return %arg0, %c0_i32 : i32, i32
  }
  func.func @transform_1(%arg0: i32) -> (i32, i32) {
    %c0_i32 = arith.constant 0 : i32
    %c0_i32_0 = arith.constant 0 : i32
    %c0_i32_1 = arith.constant 0 : i32
    return %c0_i32, %c0_i32_0 : i32, i32
  }
  func.func @transform_2(%arg0: i32) -> (i32, i32) {
    %c0_i32 = arith.constant 0 : i32
    %c0_i32_0 = arith.constant 0 : i32
    %c0_i32_1 = arith.constant 0 : i32
    return %c0_i32, %c0_i32_0 : i32, i32
  }
  func.func @transform_3(%arg0: i32) -> (i32, i32) {
    %c0_i32 = arith.constant 0 : i32
    %c0_i32_0 = arith.constant 0 : i32
    %c0_i32_1 = arith.constant 0 : i32
    return %c0_i32, %c0_i32_0 : i32, i32
  }
  func.func @transform_4(%arg0: i32) -> (i32, i32) {
    %c0_i32 = arith.constant 0 : i32
    %c0_i32_0 = arith.constant 0 : i32
    return %arg0, %c0_i32 : i32, i32
  }
}

</mosaic_0001>

<llo_original>
// kernel: tpu_custom_call.1
$region0: #{tpu_custom_call.1}
  #allocation0 [shape = 'u32[]', space=smem, size = 0x4, offset = 0x4, fixed_abs, tag = 'smem constant byte address 0x4 - core index']
  #allocation1 [shape = 'u32[144,128]{1,0:T(1,128)}', space=vmem, size = 0x12000, scoped, tag = 'internal scratch']
  %s0 = inlined_call_operand.hbm [shape: f32[1,512], index: 0, kind: input, shape index: {}]
  %s1 = inlined_call_operand.hbm [shape: f32[128,128], index: 1, kind: input, shape index: {}]
  %s2 = inlined_call_operand.hbm [shape: f32[128,128], index: 2, kind: input, shape index: {}]
  %s3 = inlined_call_operand.vmem [shape: f32[1,128], index: 3, kind: input, shape index: {}]
  %s4 = inlined_call_operand.hbm [shape: f32[1,128], index: 4, kind: output, shape index: {}]
  %s5 = sld [smem:[#allocation0]]
  $region38: #{tpu_custom_call.1} parent=0
    _
  %s7 = ssub.s32 1, %s5
  %s8 = scalar_select 0, %s7, %s5
  $region1: #{tpu_custom_call.1} parent=0
    #allocation2 [shape = 'u8[2048]{0}', space=vmem, size = 0x800, scoped, tag = 'input window, operand 0, single buffered']
    #allocation3 [shape = 's32[1]{0}', space=sflag, size = 0x4, scoped, tag = 'scoped memory for tpu_custom_call.1']
    #allocation4 [shape = 's32[1]{0}', space=sflag, size = 0x4, scoped, tag = 'scoped memory for tpu_custom_call.1']
    #allocation5 [shape = 'u8[65536]{0}', space=vmem, size = 0x10000, scoped, tag = 'input window, operand 1, single buffered']
    #allocation6 [shape = 's32[1]{0}', space=sflag, size = 0x4, scoped, tag = 'scoped memory for tpu_custom_call.1']
    #allocation7 [shape = 'u8[65536]{0}', space=vmem, size = 0x10000, scoped, tag = 'input window, operand 2, single buffered']
    #allocation8 [shape = 'u8[512]{0}', space=vmem, size = 0x400, scoped, tag = 'output window, operand 0, single buffered']
    %9 = vsyncpa [#allocation3], 0
    %10 = vsyncpa [#allocation6], 0
    %11 = vsyncpa [#allocation4], 0
    // Predicated region
    $region2: #{tpu_custom_call.1} parent=1 // pred_check
      _
    $region3: #{tpu_custom_call.1} parent=1 // pred_check_branch
      %13 = sbr.rel (0) target = $region5
    $region4: #{tpu_custom_call.1} parent=1 // pred_region
      %s15 = ssub.s32 64, 64
      %16 = vsyncadd [#allocation3], %s15
      %s18 = sshll.u32 [#allocation2], 4
      %s19 = int_to_ptr.vmem [resolvable:$true] %s18
      %21 = dma.hbm_to_vmem [thread:$0]  %s0, 64, %s19, [#allocation3]
    $region5: #{tpu_custom_call.1} parent=1 // pred_fallthru
      _
    // Predicated region
    $region6: #{tpu_custom_call.1} parent=1 // pred_check
      _
    $region7: #{tpu_custom_call.1} parent=1 // pred_check_branch
      %23 = sbr.rel (0) target = $region9
    $region8: #{tpu_custom_call.1} parent=1 // pred_region
      %s25 = ssub.s32 2048, 2048
      %26 = vsyncadd [#allocation6], %s25
      %s27 = sshll.u32 [#allocation5], 4
      %s28 = int_to_ptr.vmem [resolvable:$true] %s27
      %33 = dma.hbm_to_vmem [thread:$0]  %s1, 2048, %s28, [#allocation6], 128, 128, 8
    $region9: #{tpu_custom_call.1} parent=1 // pred_fallthru
      _
    // Predicated region
    $region10: #{tpu_custom_call.1} parent=1 // pred_check
      _
    $region11: #{tpu_custom_call.1} parent=1 // pred_check_branch
      %35 = sbr.rel (0) target = $region13
    $region12: #{tpu_custom_call.1} parent=1 // pred_region
      %s37 = ssub.s32 2048, 2048
      %38 = vsyncadd [#allocation6], %s37
      %s39 = sshll.u32 [#allocation7], 4
      %s40 = int_to_ptr.vmem [resolvable:$true] %s39
      %45 = dma.hbm_to_vmem [thread:$0]  %s2, 2048, %s40, [#allocation6], 128, 128, 8
    $region13: #{tpu_custom_call.1} parent=1 // pred_fallthru
      _
    // Predicated region
    $region14: #{tpu_custom_call.1} parent=1 // pred_check
      _
    $region15: #{tpu_custom_call.1} parent=1 // pred_check_branch
      %47 = sbr.rel (0) target = $region17
    $region16: #{tpu_custom_call.1} parent=1 // pred_region
      _
    $region17: #{tpu_custom_call.1} parent=1 // pred_fallthru
      _
    // Predicated region
    $region18: #{tpu_custom_call.1} parent=1 // pred_check
      _
    $region19: #{tpu_custom_call.1} parent=1 // pred_check_branch
      %49 = sbr.rel (0) target = $region21
    $region20: #{tpu_custom_call.1} parent=1 // pred_region
      %50 = dma.done [#allocation3], 64
    $region21: #{tpu_custom_call.1} parent=1 // pred_fallthru
      _
    // Predicated region
    $region22: #{tpu_custom_call.1} parent=1 // pred_check
      _
    $region23: #{tpu_custom_call.1} parent=1 // pred_check_branch
      %52 = sbr.rel (0) target = $region25
    $region24: #{tpu_custom_call.1} parent=1 // pred_region
      %53 = dma.done [#allocation6], 2048
    $region25: #{tpu_custom_call.1} parent=1 // pred_fallthru
      _
    // Predicated region
    $region26: #{tpu_custom_call.1} parent=1 // pred_check
      _
    $region27: #{tpu_custom_call.1} parent=1 // pred_check_branch
      %55 = sbr.rel (0) target = $region29
    $region28: #{tpu_custom_call.1} parent=1 // pred_region
      %56 = dma.done [#allocation6], 2048
    $region29: #{tpu_custom_call.1} parent=1 // pred_fallthru
      _
    %v57 = vld [vmem:[#allocation2] sm:$0xf]
    %v58 = vld [vmem:[#allocation5] sm:$0xff]
    %v59 = vld [vmem:[#allocation5 + $0x8] sm:$0xff]
    %v60 = vld [vmem:[#allocation5 + $0x10] sm:$0xff]
    %v61 = vld [vmem:[#allocation5 + $0x18] sm:$0xff]
    %v62 = vld [vmem:[#allocation5 + $0x20] sm:$0xff]
    %v63 = vld [vmem:[#allocation5 + $0x28] sm:$0xff]
    %v64 = vld [vmem:[#allocation5 + $0x30] sm:$0xff]
    %v65 = vld [vmem:[#allocation5 + $0x38] sm:$0xff]
    %v66 = vld [vmem:[#allocation5 + $0x40] sm:$0xff]
    %v67 = vld [vmem:[#allocation5 + $0x48] sm:$0xff]
    %v68 = vld [vmem:[#allocation5 + $0x50] sm:$0xff]
    %v69 = vld [vmem:[#allocation5 + $0x58] sm:$0xff]
    %v70 = vld [vmem:[#allocation5 + $0x60] sm:$0xff]
    %v71 = vld [vmem:[#allocation5 + $0x68] sm:$0xff]
    %v72 = vld [vmem:[#allocation5 + $0x70] sm:$0xff]
    %v73 = vld [vmem:[#allocation5 + $0x78] sm:$0xff]
    %v74 = vld [vmem:[#allocation7] sm:$0xff]
    %v75 = vld [vmem:[#allocation7 + $0x8] sm:$0xff]
    %v76 = vld [vmem:[#allocation7 + $0x10] sm:$0xff]
    %v77 = vld [vmem:[#allocation7 + $0x18] sm:$0xff]
    %v78 = vld [vmem:[#allocation7 + $0x20] sm:$0xff]
    %v79 = vld [vmem:[#allocation7 + $0x28] sm:$0xff]
    %v80 = vld [vmem:[#allocation7 + $0x30] sm:$0xff]
    %v81 = vld [vmem:[#allocation7 + $0x38] sm:$0xff]
    %v82 = vld [vmem:[#allocation7 + $0x40] sm:$0xff]
    %v83 = vld [vmem:[#allocation7 + $0x48] sm:$0xff]
    %v84 = vld [vmem:[#allocation7 + $0x50] sm:$0xff]
    %v85 = vld [vmem:[#allocation7 + $0x58] sm:$0xff]
    %v86 = vld [vmem:[#allocation7 + $0x60] sm:$0xff]
    %v87 = vld [vmem:[#allocation7 + $0x68] sm:$0xff]
    %v88 = vld [vmem:[#allocation7 + $0x70] sm:$0xff]
    %v89 = vld [vmem:[#allocation7 + $0x78] sm:$0xff]
    %v90 = vld [vmem:[%s3] sm:$0x1]
    %v92 = vlaneseq
    %v93 = vshrl.u32 %v92, 7
    %v94 = vsub.s32 1, %v93
    %v95 = vrot.slane %v57, %v94
    %96 = vrot.lane.b32.xlu0 %v95, 32
    %v97 = vpop.permute.xlu0 %96
    %v99 = vlaneseq
    %v100 = vshrl.u32 %v99, 7
    %v101 = vsub.s32 2, %v100
    %v102 = vrot.slane %v57, %v101
    %103 = vrot.lane.b32.xlu0 %v102, 64
    %v104 = vpop.permute.xlu0 %103
    %v106 = vlaneseq
    %v107 = vshrl.u32 %v106, 7
    %v108 = vsub.s32 3, %v107
    %v109 = vrot.slane %v57, %v108
    %110 = vrot.lane.b32.xlu0 %v109, 96
    %v111 = vpop.permute.xlu0 %110
    %vm113 = vcmask 261120
    %v114 = vsel %vm113, %v57, %v97
    %vm115 = vcmask 523264
    %v116 = vsel %vm115, %v114, %v104
    %vm117 = vcmask 785408
    %v118 = vsel %vm117, %v116, %v111
    %119 = vmatprep.subr.mxu0 0.0
    %120 = vmatpush1.msra.mxu0 %v58
    %121 = vmatprep.subr.mxu0 0.0
    %122 = vmatpush1.msra.mxu0 %v59
    %123 = vmatprep.subr.mxu0 0.0
    %124 = vmatpush1.msra.mxu0 %v60
    %125 = vmatprep.subr.mxu0 0.0
    %126 = vmatpush1.msra.mxu0 %v61
    %127 = vmatprep.subr.mxu0 0.0
    %128 = vmatpush1.msra.mxu0 %v62
    %129 = vmatprep.subr.mxu0 0.0
    %130 = vmatpush1.msra.mxu0 %v63
    %131 = vmatprep.subr.mxu0 0.0
    %132 = vmatpush1.msra.mxu0 %v64
    %133 = vmatprep.subr.mxu0 0.0
    %134 = vmatpush1.msra.mxu0 %v65
    %135 = vmatprep.subr.mxu0 0.0
    %136 = vmatpush1.msra.mxu0 %v66
    %137 = vmatprep.subr.mxu0 0.0
    %138 = vmatpush1.msra.mxu0 %v67
    %139 = vmatprep.subr.mxu0 0.0
    %140 = vmatpush1.msra.mxu0 %v68
    %141 = vmatprep.subr.mxu0 0.0
    %142 = vmatpush1.msra.mxu0 %v69
    %143 = vmatprep.subr.mxu0 0.0
    %144 = vmatpush1.msra.mxu0 %v70
    %145 = vmatprep.subr.mxu0 0.0
    %146 = vmatpush1.msra.mxu0 %v71
    %147 = vmatprep.subr.mxu0 0.0
    %148 = vmatpush1.msra.mxu0 %v72
    %149 = vmatprep.subr.mxu0 0.0
    %150 = vmatpush1.msra.mxu0 %v73
    %151 = vmatprep.subr.mxu0 0.0
    %152 = vmatpush1.msra.mxu0 0.0
    %153 = vmatprep.subr.mxu0 0.0
    %154 = vmatpush1.msra.mxu0 0.0
    %155 = vmatprep.subr.mxu0 0.0
    %156 = vmatpush1.msra.mxu0 0.0
    %157 = vmatprep.subr.mxu0 0.0
    %158 = vmatpush1.msra.mxu0 0.0
    %159 = vmatprep.subr.mxu0 0.0
    %160 = vmatpush1.msra.mxu0 0.0
    %161 = vmatprep.subr.mxu0 0.0
    %162 = vmatpush1.msra.mxu0 0.0
    %163 = vmatprep.subr.mxu0 0.0
    %164 = vmatpush1.msra.mxu0 0.0
    %165 = vmatprep.subr.mxu0 0.0
    %166 = vmatpush1.msra.mxu0 0.0
    %167 = vmatprep.subr.mxu0 0.0
    %168 = vmatpush1.msra.mxu0 0.0
    %169 = vmatprep.subr.mxu0 0.0
    %170 = vmatpush1.msra.mxu0 0.0
    %171 = vmatprep.subr.mxu0 0.0
    %172 = vmatpush1.msra.mxu0 0.0
    %173 = vmatprep.subr.mxu0 0.0
    %174 = vmatpush1.msra.mxu0 0.0
    %175 = vmatprep.subr.mxu0 0.0
    %176 = vmatpush1.msra.mxu0 0.0
    %177 = vmatprep.subr.mxu0 0.0
    %178 = vmatpush1.msra.mxu0 0.0
    %179 = vmatprep.subr.mxu0 0.0
    %180 = vmatpush1.msra.mxu0 0.0
    %181 = vmatprep.subr.mxu0 0.0
    %182 = vmatpush1.msra.mxu0 0.0
    %183 = vmatprep.mubr.f32.mxu0 0.0
    %184 = vmatmul.mubr.f32.gmra.mrb[0].mxu0 %v118
    %v185 = vpop.f32.mrb[0].mxu0
    %v186 = vadd.f32 %v90, %v185
    %v187 = vpop.f32.mrb[0].mxu0
    %188 = vdwg.mxu0
    %v189 = vlaneseq
    %v190 = vshrl.u32 %v189, 7
    %v191 = vsub.s32 0, %v190
    %v192 = vrot.slane %v57, %v191
    %193 = vrot.lane.b32.xlu0 %v192, 96
    %v194 = vpop.permute.xlu0 %193
    %197 = vrot.lane.b32.xlu0 %v102, 32
    %v198 = vpop.permute.xlu0 %197
    %200 = vrot.lane.b32.xlu0 %v109, 64
    %v201 = vpop.permute.xlu0 %200
    %v203 = vsel %vm113, %v194, %v95
    %v204 = vsel %vm115, %v203, %v198
    %v205 = vsel %vm117, %v204, %v201
    %206 = vmatprep.subr.mxu0 0.0
    %207 = vmatpush1.msra.mxu0 %v58
    %208 = vmatprep.subr.mxu0 0.0
    %209 = vmatpush1.msra.mxu0 %v59
    %210 = vmatprep.subr.mxu0 0.0
    %211 = vmatpush1.msra.mxu0 %v60
    %212 = vmatprep.subr.mxu0 0.0
    %213 = vmatpush1.msra.mxu0 %v61
    %214 = vmatprep.subr.mxu0 0.0
    %215 = vmatpush1.msra.mxu0 %v62
    %216 = vmatprep.subr.mxu0 0.0
    %217 = vmatpush1.msra.mxu0 %v63
    %218 = vmatprep.subr.mxu0 0.0
    %219 = vmatpush1.msra.mxu0 %v64
    %220 = vmatprep.subr.mxu0 0.0
    %221 = vmatpush1.msra.mxu0 %v65
    %222 = vmatprep.subr.mxu0 0.0
    %223 = vmatpush1.msra.mxu0 %v66
    %224 = vmatprep.subr.mxu0 0.0
    %225 = vmatpush1.msra.mxu0 %v67
    %226 = vmatprep.subr.mxu0 0.0
    %227 = vmatpush1.msra.mxu0 %v68
    %228 = vmatprep.subr.mxu0 0.0
    %229 = vmatpush1.msra.mxu0 %v69
    %230 = vmatprep.subr.mxu0 0.0
    %231 = vmatpush1.msra.mxu0 %v70
    %232 = vmatprep.subr.mxu0 0.0
    %233 = vmatpush1.msra.mxu0 %v71
    %234 = vmatprep.subr.mxu0 0.0
    %235 = vmatpush1.msra.mxu0 %v72
    %236 = vmatprep.subr.mxu0 0.0
    %237 = vmatpush1.msra.mxu0 %v73
    %238 = vmatprep.subr.mxu0 0.0
    %239 = vmatpush1.msra.mxu0 0.0
    %240 = vmatprep.subr.mxu0 0.0
    %241 = vmatpush1.msra.mxu0 0.0
    %242 = vmatprep.subr.mxu0 0.0
    %243 = vmatpush1.msra.mxu0 0.0
    %244 = vmatprep.subr.mxu0 0.0
    %245 = vmatpush1.msra.mxu0 0.0
    %246 = vmatprep.subr.mxu0 0.0
    %247 = vmatpush1.msra.mxu0 0.0
    %248 = vmatprep.subr.mxu0 0.0
    %249 = vmatpush1.msra.mxu0 0.0
    %250 = vmatprep.subr.mxu0 0.0
    %251 = vmatpush1.msra.mxu0 0.0
    %252 = vmatprep.subr.mxu0 0.0
    %253 = vmatpush1.msra.mxu0 0.0
    %254 = vmatprep.subr.mxu0 0.0
    %255 = vmatpush1.msra.mxu0 0.0
    %256 = vmatprep.subr.mxu0 0.0
    %257 = vmatpush1.msra.mxu0 0.0
    %258 = vmatprep.subr.mxu0 0.0
    %259 = vmatpush1.msra.mxu0 0.0
    %260 = vmatprep.subr.mxu0 0.0
    %261 = vmatpush1.msra.mxu0 0.0
    %262 = vmatprep.subr.mxu0 0.0
    %263 = vmatpush1.msra.mxu0 0.0
    %264 = vmatprep.subr.mxu0 0.0
    %265 = vmatpush1.msra.mxu0 0.0
    %266 = vmatprep.subr.mxu0 0.0
    %267 = vmatpush1.msra.mxu0 0.0
    %268 = vmatprep.subr.mxu0 0.0
    %269 = vmatpush1.msra.mxu0 0.0
    %270 = vmatprep.mubr.f32.mxu0 0.0
    %271 = vmatmul.mubr.f32.gmra.mrb[0].mxu0 %v205
    %v272 = vpop.f32.mrb[0].mxu0
    %v273 = vadd.f32 %v90, %v272
    %v274 = vpop.f32.mrb[0].mxu0
    %275 = vdwg.mxu0
    %276 = vrot.lane.b32.xlu0 %v192, 64
    %v277 = vpop.permute.xlu0 %276
    %279 = vrot.lane.b32.xlu0 %v95, 96
    %v280 = vpop.permute.xlu0 %279
    %283 = vrot.lane.b32.xlu0 %v109, 32
    %v284 = vpop.permute.xlu0 %283
    %v286 = vsel %vm113, %v277, %v280
    %v287 = vsel %vm115, %v286, %v102
    %v288 = vsel %vm117, %v287, %v284
    %289 = vmatprep.subr.mxu0 0.0
    %290 = vmatpush1.msra.mxu0 %v58
    %291 = vmatprep.subr.mxu0 0.0
    %292 = vmatpush1.msra.mxu0 %v59
    %293 = vmatprep.subr.mxu0 0.0
    %294 = vmatpush1.msra.mxu0 %v60
    %295 = vmatprep.subr.mxu0 0.0
    %296 = vmatpush1.msra.mxu0 %v61
    %297 = vmatprep.subr.mxu0 0.0
    %298 = vmatpush1.msra.mxu0 %v62
    %299 = vmatprep.subr.mxu0 0.0
    %300 = vmatpush1.msra.mxu0 %v63
    %301 = vmatprep.subr.mxu0 0.0
    %302 = vmatpush1.msra.mxu0 %v64
    %303 = vmatprep.subr.mxu0 0.0
    %304 = vmatpush1.msra.mxu0 %v65
    %305 = vmatprep.subr.mxu0 0.0
    %306 = vmatpush1.msra.mxu0 %v66
    %307 = vmatprep.subr.mxu0 0.0
    %308 = vmatpush1.msra.mxu0 %v67
    %309 = vmatprep.subr.mxu0 0.0
    %310 = vmatpush1.msra.mxu0 %v68
    %311 = vmatprep.subr.mxu0 0.0
    %312 = vmatpush1.msra.mxu0 %v69
    %313 = vmatprep.subr.mxu0 0.0
    %314 = vmatpush1.msra.mxu0 %v70
    %315 = vmatprep.subr.mxu0 0.0
    %316 = vmatpush1.msra.mxu0 %v71
    %317 = vmatprep.subr.mxu0 0.0
    %318 = vmatpush1.msra.mxu0 %v72
    %319 = vmatprep.subr.mxu0 0.0
    %320 = vmatpush1.msra.mxu0 %v73
    %321 = vmatprep.subr.mxu0 0.0
    %322 = vmatpush1.msra.mxu0 0.0
    %323 = vmatprep.subr.mxu0 0.0
    %324 = vmatpush1.msra.mxu0 0.0
    %325 = vmatprep.subr.mxu0 0.0
    %326 = vmatpush1.msra.mxu0 0.0
    %327 = vmatprep.subr.mxu0 0.0
    %328 = vmatpush1.msra.mxu0 0.0
    %329 = vmatprep.subr.mxu0 0.0
    %330 = vmatpush1.msra.mxu0 0.0
    %331 = vmatprep.subr.mxu0 0.0
    %332 = vmatpush1.msra.mxu0 0.0
    %333 = vmatprep.subr.mxu0 0.0
    %334 = vmatpush1.msra.mxu0 0.0
    %335 = vmatprep.subr.mxu0 0.0
    %336 = vmatpush1.msra.mxu0 0.0
    %337 = vmatprep.subr.mxu0 0.0
    %338 = vmatpush1.msra.mxu0 0.0
    %339 = vmatprep.subr.mxu0 0.0
    %340 = vmatpush1.msra.mxu0 0.0
    %341 = vmatprep.subr.mxu0 0.0
    %342 = vmatpush1.msra.mxu0 0.0
    %343 = vmatprep.subr.mxu0 0.0
    %344 = vmatpush1.msra.mxu0 0.0
    %345 = vmatprep.subr.mxu0 0.0
    %346 = vmatpush1.msra.mxu0 0.0
    %347 = vmatprep.subr.mxu0 0.0
    %348 = vmatpush1.msra.mxu0 0.0
    %349 = vmatprep.subr.mxu0 0.0
    %350 = vmatpush1.msra.mxu0 0.0
    %351 = vmatprep.subr.mxu0 0.0
    %352 = vmatpush1.msra.mxu0 0.0
    %353 = vmatprep.mubr.f32.mxu0 0.0
    %354 = vmatmul.mubr.f32.gmra.mrb[0].mxu0 %v288
    %v355 = vpop.f32.mrb[0].mxu0
    %v356 = vadd.f32 %v90, %v355
    %v357 = vpop.f32.mrb[0].mxu0
    %358 = vdwg.mxu0
    %359 = vrot.lane.b32.xlu0 %v192, 32
    %v360 = vpop.permute.xlu0 %359
    %362 = vrot.lane.b32.xlu0 %v95, 64
    %v363 = vpop.permute.xlu0 %362
    %365 = vrot.lane.b32.xlu0 %v102, 96
    %v366 = vpop.permute.xlu0 %365
    %v369 = vsel %vm113, %v360, %v363
    %v370 = vsel %vm115, %v369, %v366
    %v371 = vsel %vm117, %v370, %v109
    %372 = vmatprep.subr.mxu0 0.0
    %373 = vmatpush1.msra.mxu0 %v58
    %374 = vmatprep.subr.mxu0 0.0
    %375 = vmatpush1.msra.mxu0 %v59
    %376 = vmatprep.subr.mxu0 0.0
    %377 = vmatpush1.msra.mxu0 %v60
    %378 = vmatprep.subr.mxu0 0.0
    %379 = vmatpush1.msra.mxu0 %v61
    %380 = vmatprep.subr.mxu0 0.0
    %381 = vmatpush1.msra.mxu0 %v62
    %382 = vmatprep.subr.mxu0 0.0
    %383 = vmatpush1.msra.mxu0 %v63
    %384 = vmatprep.subr.mxu0 0.0
    %385 = vmatpush1.msra.mxu0 %v64
    %386 = vmatprep.subr.mxu0 0.0
    %387 = vmatpush1.msra.mxu0 %v65
    %388 = vmatprep.subr.mxu0 0.0
    %389 = vmatpush1.msra.mxu0 %v66
    %390 = vmatprep.subr.mxu0 0.0
    %391 = vmatpush1.msra.mxu0 %v67
    %392 = vmatprep.subr.mxu0 0.0
    %393 = vmatpush1.msra.mxu0 %v68
    %394 = vmatprep.subr.mxu0 0.0
    %395 = vmatpush1.msra.mxu0 %v69
    %396 = vmatprep.subr.mxu0 0.0
    %397 = vmatpush1.msra.mxu0 %v70
    %398 = vmatprep.subr.mxu0 0.0
    %399 = vmatpush1.msra.mxu0 %v71
    %400 = vmatprep.subr.mxu0 0.0
    %401 = vmatpush1.msra.mxu0 %v72
    %402 = vmatprep.subr.mxu0 0.0
    %403 = vmatpush1.msra.mxu0 %v73
    %404 = vmatprep.subr.mxu0 0.0
    %405 = vmatpush1.msra.mxu0 0.0
    %406 = vmatprep.subr.mxu0 0.0
    %407 = vmatpush1.msra.mxu0 0.0
    %408 = vmatprep.subr.mxu0 0.0
    %409 = vmatpush1.msra.mxu0 0.0
    %410 = vmatprep.subr.mxu0 0.0
    %411 = vmatpush1.msra.mxu0 0.0
    %412 = vmatprep.subr.mxu0 0.0
    %413 = vmatpush1.msra.mxu0 0.0
    %414 = vmatprep.subr.mxu0 0.0
    %415 = vmatpush1.msra.mxu0 0.0
    %416 = vmatprep.subr.mxu0 0.0
    %417 = vmatpush1.msra.mxu0 0.0
    %418 = vmatprep.subr.mxu0 0.0
    %419 = vmatpush1.msra.mxu0 0.0
    %420 = vmatprep.subr.mxu0 0.0
    %421 = vmatpush1.msra.mxu0 0.0
    %422 = vmatprep.subr.mxu0 0.0
    %423 = vmatpush1.msra.mxu0 0.0
    %424 = vmatprep.subr.mxu0 0.0
    %425 = vmatpush1.msra.mxu0 0.0
    %426 = vmatprep.subr.mxu0 0.0
    %427 = vmatpush1.msra.mxu0 0.0
    %428 = vmatprep.subr.mxu0 0.0
    %429 = vmatpush1.msra.mxu0 0.0
    %430 = vmatprep.subr.mxu0 0.0
    %431 = vmatpush1.msra.mxu0 0.0
    %432 = vmatprep.subr.mxu0 0.0
    %433 = vmatpush1.msra.mxu0 0.0
    %434 = vmatprep.subr.mxu0 0.0
    %435 = vmatpush1.msra.mxu0 0.0
    %436 = vmatprep.mubr.f32.mxu0 0.0
    %437 = vmatmul.mubr.f32.gmra.mrb[0].mxu0 %v371
    %v438 = vpop.f32.mrb[0].mxu0
    %v439 = vadd.f32 %v90, %v438
    %v440 = vpop.f32.mrb[0].mxu0
    %441 = vdwg.mxu0
    %v442 = vtanh.pop %v186
    %443 = vmatprep.subr.mxu0 0.0
    %444 = vmatpush1.msra.mxu0 %v74
    %445 = vmatprep.subr.mxu0 0.0
    %446 = vmatpush1.msra.mxu0 %v75
    %447 = vmatprep.subr.mxu0 0.0
    %448 = vmatpush1.msra.mxu0 %v76
    %449 = vmatprep.subr.mxu0 0.0
    %450 = vmatpush1.msra.mxu0 %v77
    %451 = vmatprep.subr.mxu0 0.0
    %452 = vmatpush1.msra.mxu0 %v78
    %453 = vmatprep.subr.mxu0 0.0
    %454 = vmatpush1.msra.mxu0 %v79
    %455 = vmatprep.subr.mxu0 0.0
    %456 = vmatpush1.msra.mxu0 %v80
    %457 = vmatprep.subr.mxu0 0.0
    %458 = vmatpush1.msra.mxu0 %v81
    %459 = vmatprep.subr.mxu0 0.0
    %460 = vmatpush1.msra.mxu0 %v82
    %461 = vmatprep.subr.mxu0 0.0
    %462 = vmatpush1.msra.mxu0 %v83
    %463 = vmatprep.subr.mxu0 0.0
    %464 = vmatpush1.msra.mxu0 %v84
    %465 = vmatprep.subr.mxu0 0.0
    %466 = vmatpush1.msra.mxu0 %v85
    %467 = vmatprep.subr.mxu0 0.0
    %468 = vmatpush1.msra.mxu0 %v86
    %469 = vmatprep.subr.mxu0 0.0
    %470 = vmatpush1.msra.mxu0 %v87
    %471 = vmatprep.subr.mxu0 0.0
    %472 = vmatpush1.msra.mxu0 %v88
    %473 = vmatprep.subr.mxu0 0.0
    %474 = vmatpush1.msra.mxu0 %v89
    %475 = vmatprep.subr.mxu0 0.0
    %476 = vmatpush1.msra.mxu0 0.0
    %477 = vmatprep.subr.mxu0 0.0
    %478 = vmatpush1.msra.mxu0 0.0
    %479 = vmatprep.subr.mxu0 0.0
    %480 = vmatpush1.msra.mxu0 0.0
    %481 = vmatprep.subr.mxu0 0.0
    %482 = vmatpush1.msra.mxu0 0.0
    %483 = vmatprep.subr.mxu0 0.0
    %484 = vmatpush1.msra.mxu0 0.0
    %485 = vmatprep.subr.mxu0 0.0
    %486 = vmatpush1.msra.mxu0 0.0
    %487 = vmatprep.subr.mxu0 0.0
    %488 = vmatpush1.msra.mxu0 0.0
    %489 = vmatprep.subr.mxu0 0.0
    %490 = vmatpush1.msra.mxu0 0.0
    %491 = vmatprep.subr.mxu0 0.0
    %492 = vmatpush1.msra.mxu0 0.0
    %493 = vmatprep.subr.mxu0 0.0
    %494 = vmatpush1.msra.mxu0 0.0
    %495 = vmatprep.subr.mxu0 0.0
    %496 = vmatpush1.msra.mxu0 0.0
    %497 = vmatprep.subr.mxu0 0.0
    %498 = vmatpush1.msra.mxu0 0.0
    %499 = vmatprep.subr.mxu0 0.0
    %500 = vmatpush1.msra.mxu0 0.0
    %501 = vmatprep.subr.mxu0 0.0
    %502 = vmatpush1.msra.mxu0 0.0
    %503 = vmatprep.subr.mxu0 0.0
    %504 = vmatpush1.msra.mxu0 0.0
    %505 = vmatprep.subr.mxu0 0.0
    %506 = vmatpush1.msra.mxu0 0.0
    %507 = vmatprep.mubr.f32.mxu0 0.0
    %508 = vmatmul.mubr.f32.gmra.mrb[0].mxu0 %v442
    %v509 = vpop.f32.mrb[0].mxu0
    %v510 = vadd.f32 0.0, %v509
    %v511 = vpop.f32.mrb[0].mxu0
    %512 = vdwg.mxu0
    %v513 = vadd.f32 %v273, %v510
    %v514 = vtanh.pop %v513
    %515 = vmatprep.subr.mxu0 0.0
    %516 = vmatpush1.msra.mxu0 %v74
    %517 = vmatprep.subr.mxu0 0.0
    %518 = vmatpush1.msra.mxu0 %v75
    %519 = vmatprep.subr.mxu0 0.0
    %520 = vmatpush1.msra.mxu0 %v76
    %521 = vmatprep.subr.mxu0 0.0
    %522 = vmatpush1.msra.mxu0 %v77
    %523 = vmatprep.subr.mxu0 0.0
    %524 = vmatpush1.msra.mxu0 %v78
    %525 = vmatprep.subr.mxu0 0.0
    %526 = vmatpush1.msra.mxu0 %v79
    %527 = vmatprep.subr.mxu0 0.0
    %528 = vmatpush1.msra.mxu0 %v80
    %529 = vmatprep.subr.mxu0 0.0
    %530 = vmatpush1.msra.mxu0 %v81
    %531 = vmatprep.subr.mxu0 0.0
    %532 = vmatpush1.msra.mxu0 %v82
    %533 = vmatprep.subr.mxu0 0.0
    %534 = vmatpush1.msra.mxu0 %v83
    %535 = vmatprep.subr.mxu0 0.0
    %536 = vmatpush1.msra.mxu0 %v84
    %537 = vmatprep.subr.mxu0 0.0
    %538 = vmatpush1.msra.mxu0 %v85
    %539 = vmatprep.subr.mxu0 0.0
    %540 = vmatpush1.msra.mxu0 %v86
    %541 = vmatprep.subr.mxu0 0.0
    %542 = vmatpush1.msra.mxu0 %v87
    %543 = vmatprep.subr.mxu0 0.0
    %544 = vmatpush1.msra.mxu0 %v88
    %545 = vmatprep.subr.mxu0 0.0
    %546 = vmatpush1.msra.mxu0 %v89
    %547 = vmatprep.subr.mxu0 0.0
    %548 = vmatpush1.msra.mxu0 0.0
    %549 = vmatprep.subr.mxu0 0.0
    %550 = vmatpush1.msra.mxu0 0.0
    %551 = vmatprep.subr.mxu0 0.0
    %552 = vmatpush1.msra.mxu0 0.0
    %553 = vmatprep.subr.mxu0 0.0
    %554 = vmatpush1.msra.mxu0 0.0
    %555 = vmatprep.subr.mxu0 0.0
    %556 = vmatpush1.msra.mxu0 0.0
    %557 = vmatprep.subr.mxu0 0.0
    %558 = vmatpush1.msra.mxu0 0.0
    %559 = vmatprep.subr.mxu0 0.0
    %560 = vmatpush1.msra.mxu0 0.0
    %561 = vmatprep.subr.mxu0 0.0
    %562 = vmatpush1.msra.mxu0 0.0
    %563 = vmatprep.subr.mxu0 0.0
    %564 = vmatpush1.msra.mxu0 0.0
    %565 = vmatprep.subr.mxu0 0.0
    %566 = vmatpush1.msra.mxu0 0.0
    %567 = vmatprep.subr.mxu0 0.0
    %568 = vmatpush1.msra.mxu0 0.0
    %569 = vmatprep.subr.mxu0 0.0
    %570 = vmatpush1.msra.mxu0 0.0
    %571 = vmatprep.subr.mxu0 0.0
    %572 = vmatpush1.msra.mxu0 0.0
    %573 = vmatprep.subr.mxu0 0.0
    %574 = vmatpush1.msra.mxu0 0.0
    %575 = vmatprep.subr.mxu0 0.0
    %576 = vmatpush1.msra.mxu0 0.0
    %577 = vmatprep.subr.mxu0 0.0
    %578 = vmatpush1.msra.mxu0 0.0
    %579 = vmatprep.mubr.f32.mxu0 0.0
    %580 = vmatmul.mubr.f32.gmra.mrb[0].mxu0 %v514
    %v581 = vpop.f32.mrb[0].mxu0
    %v582 = vadd.f32 0.0, %v581
    %v583 = vpop.f32.mrb[0].mxu0
    %584 = vdwg.mxu0
    %v585 = vadd.f32 %v356, %v582
    %v586 = vtanh.pop %v585
    %587 = vmatprep.subr.mxu0 0.0
    %588 = vmatpush1.msra.mxu0 %v74
    %589 = vmatprep.subr.mxu0 0.0
    %590 = vmatpush1.msra.mxu0 %v75
    %591 = vmatprep.subr.mxu0 0.0
    %592 = vmatpush1.msra.mxu0 %v76
    %593 = vmatprep.subr.mxu0 0.0
    %594 = vmatpush1.msra.mxu0 %v77
    %595 = vmatprep.subr.mxu0 0.0
    %596 = vmatpush1.msra.mxu0 %v78
    %597 = vmatprep.subr.mxu0 0.0
    %598 = vmatpush1.msra.mxu0 %v79
    %599 = vmatprep.subr.mxu0 0.0
    %600 = vmatpush1.msra.mxu0 %v80
    %601 = vmatprep.subr.mxu0 0.0
    %602 = vmatpush1.msra.mxu0 %v81
    %603 = vmatprep.subr.mxu0 0.0
    %604 = vmatpush1.msra.mxu0 %v82
    %605 = vmatprep.subr.mxu0 0.0
    %606 = vmatpush1.msra.mxu0 %v83
    %607 = vmatprep.subr.mxu0 0.0
    %608 = vmatpush1.msra.mxu0 %v84
    %609 = vmatprep.subr.mxu0 0.0
    %610 = vmatpush1.msra.mxu0 %v85
    %611 = vmatprep.subr.mxu0 0.0
    %612 = vmatpush1.msra.mxu0 %v86
    %613 = vmatprep.subr.mxu0 0.0
    %614 = vmatpush1.msra.mxu0 %v87
    %615 = vmatprep.subr.mxu0 0.0
    %616 = vmatpush1.msra.mxu0 %v88
    %617 = vmatprep.subr.mxu0 0.0
    %618 = vmatpush1.msra.mxu0 %v89
    %619 = vmatprep.subr.mxu0 0.0
    %620 = vmatpush1.msra.mxu0 0.0
    %621 = vmatprep.subr.mxu0 0.0
    %622 = vmatpush1.msra.mxu0 0.0
    %623 = vmatprep.subr.mxu0 0.0
    %624 = vmatpush1.msra.mxu0 0.0
    %625 = vmatprep.subr.mxu0 0.0
    %626 = vmatpush1.msra.mxu0 0.0
    %627 = vmatprep.subr.mxu0 0.0
    %628 = vmatpush1.msra.mxu0 0.0
    %629 = vmatprep.subr.mxu0 0.0
    %630 = vmatpush1.msra.mxu0 0.0
    %631 = vmatprep.subr.mxu0 0.0
    %632 = vmatpush1.msra.mxu0 0.0
    %633 = vmatprep.subr.mxu0 0.0
    %634 = vmatpush1.msra.mxu0 0.0
    %635 = vmatprep.subr.mxu0 0.0
    %636 = vmatpush1.msra.mxu0 0.0
    %637 = vmatprep.subr.mxu0 0.0
    %638 = vmatpush1.msra.mxu0 0.0
    %639 = vmatprep.subr.mxu0 0.0
    %640 = vmatpush1.msra.mxu0 0.0
    %641 = vmatprep.subr.mxu0 0.0
    %642 = vmatpush1.msra.mxu0 0.0
    %643 = vmatprep.subr.mxu0 0.0
    %644 = vmatpush1.msra.mxu0 0.0
    %645 = vmatprep.subr.mxu0 0.0
    %646 = vmatpush1.msra.mxu0 0.0
    %647 = vmatprep.subr.mxu0 0.0
    %648 = vmatpush1.msra.mxu0 0.0
    %649 = vmatprep.subr.mxu0 0.0
    %650 = vmatpush1.msra.mxu0 0.0
    %651 = vmatprep.mubr.f32.mxu0 0.0
    %652 = vmatmul.mubr.f32.gmra.mrb[0].mxu0 %v586
    %v653 = vpop.f32.mrb[0].mxu0
    %v654 = vadd.f32 0.0, %v653
    %v655 = vpop.f32.mrb[0].mxu0
    %656 = vdwg.mxu0
    %v657 = vadd.f32 %v439, %v654
    %v658 = vtanh.pop %v657
    %659 = vst [vmem:[#allocation8] sm:$0x1] %v658
    // Predicated region
    $region30: #{tpu_custom_call.1} parent=1 // pred_check
      _
    $region31: #{tpu_custom_call.1} parent=1 // pred_check_branch
      %661 = sbr.rel (0) target = $region33
    $region32: #{tpu_custom_call.1} parent=1 // pred_region
      %s663 = ssub.s32 16, 16
      %664 = vsyncadd [#allocation4], %s663
      %s666 = sshll.u32 [#allocation8], 4
      %s667 = int_to_ptr.vmem [resolvable:$true] %s666
      %669 = dma.vmem_to_hbm [thread:$0]  %s667, 16, %s4, [#allocation4]
    $region33: #{tpu_custom_call.1} parent=1 // pred_fallthru
      _
    // Predicated region
    $region34: #{tpu_custom_call.1} parent=1 // pred_check
      _
    $region35: #{tpu_custom_call.1} parent=1 // pred_check_branch
      %671 = sbr.rel (0) target = $region37
    $region36: #{tpu_custom_call.1} parent=1 // pred_region
      %672 = dma.done [#allocation4], 16
    $region37: #{tpu_custom_call.1} parent=1 // pred_fallthru
      _
    %673 = vsyncpa [#allocation3], 1
    %674 = vsyncpa [#allocation6], 1
    %675 = vsyncpa [#allocation4], 1

</llo_original>
